<compile_context>
chip_gen: v5e
topology: v5e:2x2
jax: 0.10.0
libtpu: 0.0.40
codegen_flags: <defaults>
</compile_context>

<pallas_src>
import jax
import jax.numpy as jnp
from jax.experimental import pallas as pl
from jax.experimental.pallas import tpu as pltpu

LN_EPS = 1e-5      # torch.nn.LayerNorm default
EPS = 1e-8         # the module's own epsilon
NEG_FILL = -1e30   # logit fill for padded modality lanes (exp underflows to 0)
M_PAD = 128        # lane-dense modality width inside the kernel


def _round_up(x, m):
    return ((x + m - 1) // m) * m


def _layer_norm(h, g, b):
    mu = jnp.mean(h, axis=-1, keepdims=True)
    var = jnp.mean((h - mu) * (h - mu), axis=-1, keepdims=True)
    return (h - mu) * jax.lax.rsqrt(var + LN_EPS) * g + b


def _make_cams_kernel(n_feats, c_dims):
    """Build a kernel for a given number of feature modalities (0 => no reweight)."""

    def kernel(x_ref, w1_ref, w2_ref, w3p_ref, vecs_ref, bp3_ref, *rest):
        feat_refs = rest[:n_feats]
        out_ref = rest[-1]

        x = x_ref[...]                                  # [Bt, C]
        w1 = w1_ref[...]                                # [C, H]
        vecs = vecs_ref[...]                            # [6, H]
        b1, g1, be1 = vecs[0:1], vecs[1:2], vecs[2:3]
        b2, g2, be2 = vecs[3:4], vecs[4:5], vecs[5:6]

        # ---- Linear 1: K = C is tiny -> VPU broadcast mul-adds (skip MXU) ----
        h = b1 + x[:, 0:1] * w1[0:1, :]
        for k in range(1, c_dims):
            h = h + x[:, k:k + 1] * w1[k:k + 1, :]
        h = _layer_norm(h, g1, be1)
        h = jnp.maximum(h, 0.0)

        # ---- Linear 2 (H x H) on MXU ----
        h = jnp.dot(h, w2_ref[...], preferred_element_type=jnp.float32) + b2
        h = _layer_norm(h, g2, be2)
        h = jnp.maximum(h, 0.0)

        # ---- Linear 3 (H x M_PAD, lane padded) + preferences ----
        # Padded lanes of w3p are 0 and bp3 carries -1e30 there, so softmax
        # yields exactly 0 in the padded lanes.
        raw = jnp.dot(h, w3p_ref[...], preferred_element_type=jnp.float32) + bp3_ref[...]

        # softmax over the (padded) modality lane axis
        mx = jnp.max(raw, axis=-1, keepdims=True)
        e = jnp.exp(raw - mx)
        w = e * pl.reciprocal(jnp.sum(e, axis=-1, keepdims=True), approx=True)

        if n_feats > 0:
            lane = jax.lax.broadcasted_iota(jnp.int32, (1, M_PAD), 1)
            q = jnp.zeros_like(w)
            for m_idx in range(n_feats):
                f = feat_refs[m_idx][...]                           # [Bt, F_m]
                s = jnp.sum(f * f, axis=-1, keepdims=True)          # [Bt, 1]
                q = q + jnp.where(lane == m_idx, jnp.sqrt(s), 0.0)  # scatter to lane m
            q = q * pl.reciprocal(jnp.sum(q, axis=-1, keepdims=True) + EPS, approx=True)
            w = w * q
            w = w * pl.reciprocal(jnp.sum(w, axis=-1, keepdims=True) + EPS, approx=True)

        out_ref[...] = w

    return kernel


def init_params(key, complexity_dims=4, hidden_dim=64, n_modalities=4):
    """Deterministic synthetic parameters, already packed into the kernel layout."""
    ks = jax.random.split(key, 6)

    def lin(kw, kb, fan_in, fan_out):
        bound = 1.0 / (fan_in ** 0.5)
        w = jax.random.uniform(kw, (fan_in, fan_out), jnp.float32, -bound, bound)
        b = jax.random.uniform(kb, (1, fan_out), jnp.float32, -bound, bound)
        return w, b

    w1, b1 = lin(ks[0], ks[1], complexity_dims, hidden_dim)
    w2, b2 = lin(ks[2], ks[3], hidden_dim, hidden_dim)
    w3, b3 = lin(ks[4], ks[5], hidden_dim, n_modalities)
    g1 = jnp.ones((1, hidden_dim), jnp.float32)
    be1 = jnp.zeros((1, hidden_dim), jnp.float32)
    g2 = jnp.ones((1, hidden_dim), jnp.float32)
    be2 = jnp.zeros((1, hidden_dim), jnp.float32)
    prefs = jnp.ones((1, n_modalities), jnp.float32)   # nn.Parameter(torch.ones(M))

    # Packed layouts (done once, outside the hot path):
    vecs = jnp.concatenate([b1, g1, be1, b2, g2, be2], axis=0)            # [6, H]
    w3p = jnp.zeros((hidden_dim, M_PAD), jnp.float32).at[:, :n_modalities].set(w3)
    bp3 = jnp.full((1, M_PAD), NEG_FILL, jnp.float32).at[:, :n_modalities].set(b3 + prefs)

    return dict(w1=w1, w2=w2, w3p=w3p, vecs=vecs, bp3=bp3,
                hidden_dim=hidden_dim, n_modalities=n_modalities,
                complexity_dims=complexity_dims)


def complexity_aware_modality_selection(complexity_vectors, params,
                                        feature_vectors=None, *, block_b=512):
    """Mirrors ComplexityAwareModalitySelection.forward."""
    x = complexity_vectors.astype(jnp.float32)
    B, C = x.shape
    H = params["hidden_dim"]
    M = params["n_modalities"]

    feats = []
    if feature_vectors is not None:
        feats = [f.astype(jnp.float32) for f in feature_vectors]

    # Batch tiling: block must be a multiple of 8 (f32 sublane); pad ragged tail.
    btile = min(int(block_b), _round_up(B, 8))
    Bp = _round_up(B, btile)
    if Bp != B:
        x = jnp.pad(x, ((0, Bp - B), (0, 0)))
        feats = [jnp.pad(f, ((0, Bp - B), (0, 0))) for f in feats]

    n_feats = len(feats)
    kernel = _make_cams_kernel(n_feats, C)

    in_specs = [
        pl.BlockSpec((btile, C), lambda i: (i, 0)),        # complexity vectors
        pl.BlockSpec((C, H), lambda i: (0, 0)),            # w1 (VMEM resident)
        pl.BlockSpec((H, H), lambda i: (0, 0)),            # w2
        pl.BlockSpec((H, M_PAD), lambda i: (0, 0)),        # w3 (lane padded)
        pl.BlockSpec((6, H), lambda i: (0, 0)),            # packed biases/LN params
        pl.BlockSpec((1, M_PAD), lambda i: (0, 0)),        # b3 + prefs (lane padded)
    ]
    for f in feats:
        Fm = f.shape[-1]
        in_specs.append(pl.BlockSpec((btile, Fm), lambda i: (i, 0)))

    out = pl.pallas_call(
        kernel,
        out_shape=jax.ShapeDtypeStruct((Bp, M_PAD), jnp.float32),
        grid=(Bp // btile,),
        in_specs=in_specs,
        out_specs=pl.BlockSpec((btile, M_PAD), lambda i: (i, 0)),
        compiler_params=pltpu.CompilerParams(
            dimension_semantics=("parallel",),
            vmem_limit_bytes=32 * 1024 * 1024,
        ),
    )(x, params["w1"], params["w2"], params["w3p"],
      params["vecs"], params["bp3"], *feats)

    return out[:B, :M]


if __name__ == "__main__":
    B, C, H, M, F = 16, 4, 64, 4, 32

    key = jax.random.PRNGKey(0)
    k_param, k_x, k_f = jax.random.split(key, 3)

    params = init_params(k_param, complexity_dims=C, hidden_dim=H, n_modalities=M)

    complexity_vectors = jax.random.normal(k_x, (B, C), jnp.float32)
    feature_vectors = [
        jax.random.normal(jax.random.fold_in(k_f, i), (B, F), jnp.float32)
        for i in range(M)
    ]

    # Use a small batch tile so the grid actually has >1 step at these shapes.
    # Path 1: complexity only (feature_vectors=None)
    w_no_feat = complexity_aware_modality_selection(
        complexity_vectors, params, block_b=8)
    jax.block_until_ready(w_no_feat)

    # Path 2: with feature-quality re-weighting
    w_feat = complexity_aware_modality_selection(
        complexity_vectors, params, feature_vectors, block_b=8)
    jax.block_until_ready(w_feat)

    assert w_no_feat.shape == (B, M) and w_feat.shape == (B, M)
    assert bool(jnp.all(jnp.isfinite(w_no_feat)))
    assert bool(jnp.all(jnp.isfinite(w_feat)))
    print("KERNEL_OK")
</pallas_src>

<mosaic_0001>
module attributes {stable_mosaic.version = 11 : i64} {
  func.func @kernel(%arg0: i32, %arg1: memref<8x4xf32, #tpu.memory_space<vmem>>, %arg2: memref<4x64xf32, #tpu.memory_space<vmem>>, %arg3: memref<64x64xf32, #tpu.memory_space<vmem>>, %arg4: memref<64x128xf32, #tpu.memory_space<vmem>>, %arg5: memref<6x64xf32, #tpu.memory_space<vmem>>, %arg6: memref<1x128xf32, #tpu.memory_space<vmem>>, %arg7: memref<8x128xf32, #tpu.memory_space<vmem>>) attributes {dimension_semantics = [#tpu.dimension_semantics<parallel>], iteration_bounds = array<i64: 2>, scalar_prefetch = 0 : i64, scratch_operands = 0 : i64, tpu.core_type = #tpu.core_type<tc>, window_params = [{transform_indices = @transform_0, window_bounds = array<i64: 8, 4>}, {pipeline_mode = #tpu.pipeline_mode<synchronous>, transform_indices = @transform_1, window_bounds = array<i64: 4, 64>}, {pipeline_mode = #tpu.pipeline_mode<synchronous>, transform_indices = @transform_2, window_bounds = array<i64: 64, 64>}, {pipeline_mode = #tpu.pipeline_mode<synchronous>, transform_indices = @transform_3, window_bounds = array<i64: 64, 128>}, {pipeline_mode = #tpu.pipeline_mode<synchronous>, transform_indices = @transform_4, window_bounds = array<i64: 6, 64>}, {pipeline_mode = #tpu.pipeline_mode<synchronous>, transform_indices = @transform_5, window_bounds = array<i64: 1, 128>}, {transform_indices = @transform_6, window_bounds = array<i64: 8, 128>}]} {
    %c0 = arith.constant 0 : index
    %c0_0 = arith.constant 0 : index
    %0 = vector.load %arg1[%c0, %c0_0] : memref<8x4xf32, #tpu.memory_space<vmem>>, vector<8x4xf32>
    %c0_1 = arith.constant 0 : index
    %c0_2 = arith.constant 0 : index
    %1 = vector.load %arg2[%c0_1, %c0_2] : memref<4x64xf32, #tpu.memory_space<vmem>>, vector<4x64xf32>
    %c0_3 = arith.constant 0 : index
    %c0_4 = arith.constant 0 : index
    %2 = vector.load %arg5[%c0_3, %c0_4] : memref<6x64xf32, #tpu.memory_space<vmem>>, vector<6x64xf32>
    %3 = vector.extract_strided_slice %2 {offsets = [0, 0], sizes = [1, 64], strides = [1, 1]} : vector<6x64xf32> to vector<1x64xf32>
    %4 = vector.extract_strided_slice %2 {offsets = [1, 0], sizes = [1, 64], strides = [1, 1]} : vector<6x64xf32> to vector<1x64xf32>
    %5 = vector.extract_strided_slice %2 {offsets = [2, 0], sizes = [1, 64], strides = [1, 1]} : vector<6x64xf32> to vector<1x64xf32>
    %6 = vector.extract_strided_slice %2 {offsets = [3, 0], sizes = [1, 64], strides = [1, 1]} : vector<6x64xf32> to vector<1x64xf32>
    %7 = vector.extract_strided_slice %2 {offsets = [4, 0], sizes = [1, 64], strides = [1, 1]} : vector<6x64xf32> to vector<1x64xf32>
    %8 = vector.extract_strided_slice %2 {offsets = [5, 0], sizes = [1, 64], strides = [1, 1]} : vector<6x64xf32> to vector<1x64xf32>
    %9 = vector.extract_strided_slice %0 {offsets = [0, 0], sizes = [8, 1], strides = [1, 1]} : vector<8x4xf32> to vector<8x1xf32>
    %10 = vector.extract_strided_slice %1 {offsets = [0, 0], sizes = [1, 64], strides = [1, 1]} : vector<4x64xf32> to vector<1x64xf32>
    %11 = vector.broadcast %9 : vector<8x1xf32> to vector<8x64xf32>
    %12 = vector.broadcast %10 : vector<1x64xf32> to vector<8x64xf32>
    %13 = arith.mulf %11, %12 : vector<8x64xf32>
    %14 = vector.broadcast %3 : vector<1x64xf32> to vector<8x64xf32>
    %15 = arith.addf %14, %13 : vector<8x64xf32>
    %16 = vector.extract_strided_slice %0 {offsets = [0, 1], sizes = [8, 1], strides = [1, 1]} : vector<8x4xf32> to vector<8x1xf32>
    %17 = vector.extract_strided_slice %1 {offsets = [1, 0], sizes = [1, 64], strides = [1, 1]} : vector<4x64xf32> to vector<1x64xf32>
    %18 = vector.broadcast %16 : vector<8x1xf32> to vector<8x64xf32>
    %19 = vector.broadcast %17 : vector<1x64xf32> to vector<8x64xf32>
    %20 = arith.mulf %18, %19 : vector<8x64xf32>
    %21 = arith.addf %15, %20 : vector<8x64xf32>
    %22 = vector.extract_strided_slice %0 {offsets = [0, 2], sizes = [8, 1], strides = [1, 1]} : vector<8x4xf32> to vector<8x1xf32>
    %23 = vector.extract_strided_slice %1 {offsets = [2, 0], sizes = [1, 64], strides = [1, 1]} : vector<4x64xf32> to vector<1x64xf32>
    %24 = vector.broadcast %22 : vector<8x1xf32> to vector<8x64xf32>
    %25 = vector.broadcast %23 : vector<1x64xf32> to vector<8x64xf32>
    %26 = arith.mulf %24, %25 : vector<8x64xf32>
    %27 = arith.addf %21, %26 : vector<8x64xf32>
    %28 = vector.extract_strided_slice %0 {offsets = [0, 3], sizes = [8, 1], strides = [1, 1]} : vector<8x4xf32> to vector<8x1xf32>
    %29 = vector.extract_strided_slice %1 {offsets = [3, 0], sizes = [1, 64], strides = [1, 1]} : vector<4x64xf32> to vector<1x64xf32>
    %30 = vector.broadcast %28 : vector<8x1xf32> to vector<8x64xf32>
    %31 = vector.broadcast %29 : vector<1x64xf32> to vector<8x64xf32>
    %32 = arith.mulf %30, %31 : vector<8x64xf32>
    %33 = arith.addf %27, %32 : vector<8x64xf32>
    %cst = arith.constant dense<0.000000e+00> : vector<8xf32>
    %34 = vector.multi_reduction <add>, %33, %cst [1] : vector<8x64xf32> to vector<8xf32>
    %35 = vector.shape_cast %34 : vector<8xf32> to vector<8x1xf32>
    %cst_5 = arith.constant 6.400000e+01 : f32
    %36 = vector.broadcast %cst_5 : f32 to vector<8x1xf32>
    %37 = arith.divf %35, %36 : vector<8x1xf32>
    %38 = vector.broadcast %37 : vector<8x1xf32> to vector<8x64xf32>
    %39 = arith.subf %33, %38 : vector<8x64xf32>
    %40 = vector.broadcast %37 : vector<8x1xf32> to vector<8x64xf32>
    %41 = arith.subf %33, %40 : vector<8x64xf32>
    %42 = arith.mulf %39, %41 : vector<8x64xf32>
    %cst_6 = arith.constant dense<0.000000e+00> : vector<8xf32>
    %43 = vector.multi_reduction <add>, %42, %cst_6 [1] : vector<8x64xf32> to vector<8xf32>
    %44 = vector.shape_cast %43 : vector<8xf32> to vector<8x1xf32>
    %cst_7 = arith.constant 6.400000e+01 : f32
    %45 = vector.broadcast %cst_7 : f32 to vector<8x1xf32>
    %46 = arith.divf %44, %45 : vector<8x1xf32>
    %47 = vector.broadcast %37 : vector<8x1xf32> to vector<8x64xf32>
    %48 = arith.subf %33, %47 : vector<8x64xf32>
    %cst_8 = arith.constant 9.99999974E-6 : f32
    %49 = vector.broadcast %cst_8 : f32 to vector<8x1xf32>
    %50 = arith.addf %46, %49 : vector<8x1xf32>
    %51 = math.rsqrt %50 : vector<8x1xf32>
    %52 = vector.broadcast %51 : vector<8x1xf32> to vector<8x64xf32>
    %53 = arith.mulf %48, %52 : vector<8x64xf32>
    %54 = vector.broadcast %4 : vector<1x64xf32> to vector<8x64xf32>
    %55 = arith.mulf %53, %54 : vector<8x64xf32>
    %56 = vector.broadcast %5 : vector<1x64xf32> to vector<8x64xf32>
    %57 = arith.addf %55, %56 : vector<8x64xf32>
    %cst_9 = arith.constant 0.000000e+00 : f32
    %58 = vector.broadcast %cst_9 : f32 to vector<8x64xf32>
    %59 = arith.maximumf %57, %58 : vector<8x64xf32>
    %c0_10 = arith.constant 0 : index
    %c0_11 = arith.constant 0 : index
    %60 = vector.load %arg3[%c0_10, %c0_11] : memref<64x64xf32, #tpu.memory_space<vmem>>, vector<64x64xf32>
    %cst_12 = arith.constant dense<0.000000e+00> : vector<8x64xf32>
    %61 = tpu.matmul %59, %60, %cst_12 {dimension_numbers = #tpu.dot_dimension_numbers<[1], [0], [0], [1], [0, 0, 1, 1], [], []>} : vector<8x64xf32>, vector<64x64xf32>, vector<8x64xf32> -> vector<8x64xf32>
    %62 = vector.broadcast %6 : vector<1x64xf32> to vector<8x64xf32>
    %63 = arith.addf %61, %62 : vector<8x64xf32>
    %cst_13 = arith.constant dense<0.000000e+00> : vector<8xf32>
    %64 = vector.multi_reduction <add>, %63, %cst_13 [1] : vector<8x64xf32> to vector<8xf32>
    %65 = vector.shape_cast %64 : vector<8xf32> to vector<8x1xf32>
    %cst_14 = arith.constant 6.400000e+01 : f32
    %66 = vector.broadcast %cst_14 : f32 to vector<8x1xf32>
    %67 = arith.divf %65, %66 : vector<8x1xf32>
    %68 = vector.broadcast %67 : vector<8x1xf32> to vector<8x64xf32>
    %69 = arith.subf %63, %68 : vector<8x64xf32>
    %70 = vector.broadcast %67 : vector<8x1xf32> to vector<8x64xf32>
    %71 = arith.subf %63, %70 : vector<8x64xf32>
    %72 = arith.mulf %69, %71 : vector<8x64xf32>
    %cst_15 = arith.constant dense<0.000000e+00> : vector<8xf32>
    %73 = vector.multi_reduction <add>, %72, %cst_15 [1] : vector<8x64xf32> to vector<8xf32>
    %74 = vector.shape_cast %73 : vector<8xf32> to vector<8x1xf32>
    %cst_16 = arith.constant 6.400000e+01 : f32
    %75 = vector.broadcast %cst_16 : f32 to vector<8x1xf32>
    %76 = arith.divf %74, %75 : vector<8x1xf32>
    %77 = vector.broadcast %67 : vector<8x1xf32> to vector<8x64xf32>
    %78 = arith.subf %63, %77 : vector<8x64xf32>
    %cst_17 = arith.constant 9.99999974E-6 : f32
    %79 = vector.broadcast %cst_17 : f32 to vector<8x1xf32>
    %80 = arith.addf %76, %79 : vector<8x1xf32>
    %81 = math.rsqrt %80 : vector<8x1xf32>
    %82 = vector.broadcast %81 : vector<8x1xf32> to vector<8x64xf32>
    %83 = arith.mulf %78, %82 : vector<8x64xf32>
    %84 = vector.broadcast %7 : vector<1x64xf32> to vector<8x64xf32>
    %85 = arith.mulf %83, %84 : vector<8x64xf32>
    %86 = vector.broadcast %8 : vector<1x64xf32> to vector<8x64xf32>
    %87 = arith.addf %85, %86 : vector<8x64xf32>
    %cst_18 = arith.constant 0.000000e+00 : f32
    %88 = vector.broadcast %cst_18 : f32 to vector<8x64xf32>
    %89 = arith.maximumf %87, %88 : vector<8x64xf32>
    %c0_19 = arith.constant 0 : index
    %c0_20 = arith.constant 0 : index
    %90 = vector.load %arg4[%c0_19, %c0_20] : memref<64x128xf32, #tpu.memory_space<vmem>>, vector<64x128xf32>
    %cst_21 = arith.constant dense<0.000000e+00> : vector<8x128xf32>
    %91 = tpu.matmul %89, %90, %cst_21 {dimension_numbers = #tpu.dot_dimension_numbers<[1], [0], [0], [1], [0, 0, 1, 1], [], []>} : vector<8x64xf32>, vector<64x128xf32>, vector<8x128xf32> -> vector<8x128xf32>
    %c0_22 = arith.constant 0 : index
    %c0_23 = arith.constant 0 : index
    %92 = vector.load %arg6[%c0_22, %c0_23] : memref<1x128xf32, #tpu.memory_space<vmem>>, vector<1x128xf32>
    %93 = vector.broadcast %92 : vector<1x128xf32> to vector<8x128xf32>
    %94 = arith.addf %91, %93 : vector<8x128xf32>
    %cst_24 = arith.constant dense<0xFF800000> : vector<8xf32>
    %95 = vector.multi_reduction <maximumf>, %94, %cst_24 [1] : vector<8x128xf32> to vector<8xf32>
    %96 = vector.shape_cast %95 : vector<8xf32> to vector<8x1xf32>
    %97 = vector.broadcast %96 : vector<8x1xf32> to vector<8x128xf32>
    %98 = arith.subf %94, %97 : vector<8x128xf32>
    %99 = math.exp %98 : vector<8x128xf32>
    %cst_25 = arith.constant dense<0.000000e+00> : vector<8xf32>
    %100 = vector.multi_reduction <add>, %99, %cst_25 [1] : vector<8x128xf32> to vector<8xf32>
    %101 = vector.shape_cast %100 : vector<8xf32> to vector<8x1xf32>
    %102 = tpu.reciprocal %101 {approx = true} : vector<8x1xf32> -> vector<8x1xf32>
    %103 = vector.broadcast %102 : vector<8x1xf32> to vector<8x128xf32>
    %104 = arith.mulf %99, %103 : vector<8x128xf32>
    %c0_26 = arith.constant 0 : index
    %c0_27 = arith.constant 0 : index
    %105 = vector.load %arg7[%c0_26, %c0_27] : memref<8x128xf32, #tpu.memory_space<vmem>>, vector<8x128xf32>
    tpu.vector_store %arg7[%c0_26, %c0_27], %104 {strides = array<i32>} : memref<8x128xf32, #tpu.memory_space<vmem>>, vector<8x128xf32>,
    return
  }
  func.func @transform_0(%arg0: i32) -> (i32, i32) {
    %c0_i32 = arith.constant 0 : i32
    %c0_i32_0 = arith.constant 0 : i32
    return %arg0, %c0_i32 : i32, i32
  }
  func.func @transform_1(%arg0: i32) -> (i32, i32) {
    %c0_i32 = arith.constant 0 : i32
    %c0_i32_0 = arith.constant 0 : i32
    %c0_i32_1 = arith.constant 0 : i32
    return %c0_i32, %c0_i32_0 : i32, i32
  }
  func.func @transform_2(%arg0: i32) -> (i32, i32) {
    %c0_i32 = arith.constant 0 : i32
    %c0_i32_0 = arith.constant 0 : i32
    %c0_i32_1 = arith.constant 0 : i32
    return %c0_i32, %c0_i32_0 : i32, i32
  }
  func.func @transform_3(%arg0: i32) -> (i32, i32) {
    %c0_i32 = arith.constant 0 : i32
    %c0_i32_0 = arith.constant 0 : i32
    %c0_i32_1 = arith.constant 0 : i32
    return %c0_i32, %c0_i32_0 : i32, i32
  }
  func.func @transform_4(%arg0: i32) -> (i32, i32) {
    %c0_i32 = arith.constant 0 : i32
    %c0_i32_0 = arith.constant 0 : i32
    %c0_i32_1 = arith.constant 0 : i32
    return %c0_i32, %c0_i32_0 : i32, i32
  }
  func.func @transform_5(%arg0: i32) -> (i32, i32) {
    %c0_i32 = arith.constant 0 : i32
    %c0_i32_0 = arith.constant 0 : i32
    %c0_i32_1 = arith.constant 0 : i32
    return %c0_i32, %c0_i32_0 : i32, i32
  }
  func.func @transform_6(%arg0: i32) -> (i32, i32) {
    %c0_i32 = arith.constant 0 : i32
    %c0_i32_0 = arith.constant 0 : i32
    return %arg0, %c0_i32 : i32, i32
  }
}

</mosaic_0001>

<llo_original>
// kernel: tpu_custom_call.1
$region0: #{tpu_custom_call.1}
  #allocation0 [shape = 'u32[]', space=smem, size = 0x4, offset = 0x4, fixed_abs, tag = 'smem constant byte address 0x4 - core index']
  #allocation1 [shape = 'u32[72,128]{1,0:T(1,128)}', space=vmem, size = 0x9000, scoped, tag = 'internal scratch']
  %s0 = inlined_call_operand.vmem [shape: f32[16,4], index: 0, kind: input, shape index: {}]
  %s1 = inlined_call_operand.vmem [shape: f32[4,64], index: 1, kind: input, shape index: {}]
  %s2 = inlined_call_operand.hbm [shape: f32[64,64], index: 2, kind: input, shape index: {}]
  %s3 = inlined_call_operand.hbm [shape: f32[64,128], index: 3, kind: input, shape index: {}]
  %s4 = inlined_call_operand.vmem [shape: f32[6,64], index: 4, kind: input, shape index: {}]
  %s5 = inlined_call_operand.vmem [shape: f32[1,128], index: 5, kind: input, shape index: {}]
  %s6 = inlined_call_operand.hbm [shape: f32[16,128], index: 6, kind: output, shape index: {}]
  %s7 = sld [smem:[#allocation0]]
  $region65: #{tpu_custom_call.1} parent=0
    _
  %s9 = ssub.s32 1, %s7
  %s10 = scalar_select 0, %s9, %s7
  $region1: #{tpu_custom_call.1} parent=0
    #allocation2 [shape = 'u8[32768]{0}', space=vmem, size = 0x8000, scoped, tag = 'input window, operand 2, single buffered']
    #allocation3 [shape = 's32[2]{0}', space=sflag, size = 0x8, scoped, tag = 'scoped memory for tpu_custom_call.1']
    #allocation4 [shape = 's32[2]{0}', space=sflag, size = 0x8, scoped, tag = 'scoped memory for tpu_custom_call.1']
    #allocation5 [shape = 'u8[32768]{0}', space=vmem, size = 0x8000, scoped, tag = 'input window, operand 3, single buffered']
    #allocation6 [shape = 's32[1]{0}', space=sflag, size = 0x4, scoped, tag = 'scoped memory for tpu_custom_call.1']
    #allocation7 [shape = 'u8[8192]{0}', space=vmem, size = 0x2000, scoped, tag = 'output window, operand 0']
    %11 = vsyncpa [#allocation3], 0
    %12 = vsyncpa [#allocation6], 0
    %13 = vsyncpa [#allocation4], 0
    %s14 = scalar_lea.sflag [#allocation4], 1
    %15 = vsyncpa %s14, 0
    loop: start=0, step=1, limit=4
    $region2: #{tpu_custom_call.1} parent=1 // loop_pre_header
      _
    $region3: #{tpu_custom_call.1} parent=1 // loop_header
      %s17 = sphi 0, %s21
      %p18 = scmp.ge.s32.totalorder %s17, 4
      %s27 = sphi 0, %s29
      %s30 = sphi 0, %s27
      %s31 = sphi 0, %s30
      %s47 = sphi 0, %s31
      %s51 = sphi 0, %s51
      %s53 = sphi 0, %s51
      %s54 = sphi 0, %s53
      %s68 = sphi 0, %s54
      %s72 = sphi 0, %s72
      %s74 = sphi 0, %s72
      %s75 = sphi 0, %s74
      %s89 = sphi 0, %s75
      %s93 = sphi 0, %s93
      %s95 = sphi 0, %s93
      %s96 = sphi 0, %s95
      %s110 = sphi 0, %s96
      %s114 = sphi 0, %s114
      %s116 = sphi 0, %s114
      %s117 = sphi 0, %s116
      %s131 = sphi 0, %s117
      %s135 = sphi 0, %s135
      %s137 = sphi 0, %s135
      %s138 = sphi 0, %s137
      %s152 = sphi 0, %s138
      %s158 = sphi 0, %s160
      %s161 = sphi 0, %s158
      %s162 = sphi 0, %s161
      %s178 = sphi 0, %s162
    $region4: #{tpu_custom_call.1} parent=1 // loop_header_branch
      %20 = sbr.rel (%p18) target = $region8
    $region5: #{tpu_custom_call.1} parent=1 // loop_body
      %s22 = ssub.s32 %s17, 1
      %s23 = ssub.s32 %s17, 2
      %s24 = sadd.s32 %s17, 1
      %s25 = ssub.s32 %s17, %s24
      %p26 = scmp.eq.s32.totalorder %s25, 0
      %s28 = sadd.s32 %s27, 1
      %s29 = scalar_select %p26, %s27, %s28
      %p32 = pneg %p26
      %p33 = scmp.eq.s32.totalorder %s17, 1
      %p34 = por %p32, %p33
      %p35 = scmp.ne.s32.totalorder %s27, %s30
      %p36 = scmp.eq.s32.totalorder %s17, 0
      %p37 = por %p35, %p36
      %p38 = scmp.ne.s32.totalorder %s27, %s30
      %p39 = scmp.eq.s32.totalorder %s22, 1
      %p40 = por %p38, %p39
      %p41 = scmp.ne.s32.totalorder %s30, %s31
      %p42 = scmp.eq.s32.totalorder %s22, 0
      %p43 = por %p41, %p42
      %p44 = scmp.ne.s32.totalorder %s30, %s31
      %p45 = scmp.eq.s32.totalorder %s23, 1
      %p46 = por %p44, %p45
      %p48 = scmp.ne.s32.totalorder %s31, %s47
      %p49 = scmp.eq.s32.totalorder %s23, 0
      %p50 = por %p48, %p49
      %s52 = sadd.s32 %s51, 1
      %p55 = scmp.eq.s32.totalorder %s17, 1
      %p56 = scmp.ne.s32.totalorder %s51, %s53
      %p57 = scmp.eq.s32.totalorder %s17, 0
      %p58 = por %p56, %p57
      %p59 = scmp.ne.s32.totalorder %s51, %s53
      %p60 = scmp.eq.s32.totalorder %s22, 1
      %p61 = por %p59, %p60
      %p62 = scmp.ne.s32.totalorder %s53, %s54
      %p63 = scmp.eq.s32.totalorder %s22, 0
      %p64 = por %p62, %p63
      %p65 = scmp.ne.s32.totalorder %s53, %s54
      %p66 = scmp.eq.s32.totalorder %s23, 1
      %p67 = por %p65, %p66
      %p69 = scmp.ne.s32.totalorder %s54, %s68
      %p70 = scmp.eq.s32.totalorder %s23, 0
      %p71 = por %p69, %p70
      %s73 = sadd.s32 %s72, 1
      %p76 = scmp.eq.s32.totalorder %s17, 1
      %p77 = scmp.ne.s32.totalorder %s72, %s74
      %p78 = scmp.eq.s32.totalorder %s17, 0
      %p79 = por %p77, %p78
      %p80 = scmp.ne.s32.totalorder %s72, %s74
      %p81 = scmp.eq.s32.totalorder %s22, 1
      %p82 = por %p80, %p81
      %p83 = scmp.ne.s32.totalorder %s74, %s75
      %p84 = scmp.eq.s32.totalorder %s22, 0
      %p85 = por %p83, %p84
      %p86 = scmp.ne.s32.totalorder %s74, %s75
      %p87 = scmp.eq.s32.totalorder %s23, 1
      %p88 = por %p86, %p87
      %p90 = scmp.ne.s32.totalorder %s75, %s89
      %p91 = scmp.eq.s32.totalorder %s23, 0
      %p92 = por %p90, %p91
      %s94 = sadd.s32 %s93, 1
      %p97 = scmp.eq.s32.totalorder %s17, 1
      %p98 = scmp.ne.s32.totalorder %s93, %s95
      %p99 = scmp.eq.s32.totalorder %s17, 0
      %p100 = por %p98, %p99
      %p101 = scmp.ne.s32.totalorder %s93, %s95
      %p102 = scmp.eq.s32.totalorder %s22, 1
      %p103 = por %p101, %p102
      %p104 = scmp.ne.s32.totalorder %s95, %s96
      %p105 = scmp.eq.s32.totalorder %s22, 0
      %p106 = por %p104, %p105
      %p107 = scmp.ne.s32.totalorder %s95, %s96
      %p108 = scmp.eq.s32.totalorder %s23, 1
      %p109 = por %p107, %p108
      %p111 = scmp.ne.s32.totalorder %s96, %s110
      %p112 = scmp.eq.s32.totalorder %s23, 0
      %p113 = por %p111, %p112
      %s115 = sadd.s32 %s114, 1
      %p118 = scmp.eq.s32.totalorder %s17, 1
      %p119 = scmp.ne.s32.totalorder %s114, %s116
      %p120 = scmp.eq.s32.totalorder %s17, 0
      %p121 = por %p119, %p120
      %p122 = scmp.ne.s32.totalorder %s114, %s116
      %p123 = scmp.eq.s32.totalorder %s22, 1
      %p124 = por %p122, %p123
      %p125 = scmp.ne.s32.totalorder %s116, %s117
      %p126 = scmp.eq.s32.totalorder %s22, 0
      %p127 = por %p125, %p126
      %p128 = scmp.ne.s32.totalorder %s116, %s117
      %p129 = scmp.eq.s32.totalorder %s23, 1
      %p130 = por %p128, %p129
      %p132 = scmp.ne.s32.totalorder %s117, %s131
      %p133 = scmp.eq.s32.totalorder %s23, 0
      %p134 = por %p132, %p133
      %s136 = sadd.s32 %s135, 1
      %p139 = scmp.eq.s32.totalorder %s17, 1
      %p140 = scmp.ne.s32.totalorder %s135, %s137
      %p141 = scmp.eq.s32.totalorder %s17, 0
      %p142 = por %p140, %p141
      %p143 = scmp.ne.s32.totalorder %s135, %s137
      %p144 = scmp.eq.s32.totalorder %s22, 1
      %p145 = por %p143, %p144
      %p146 = scmp.ne.s32.totalorder %s137, %s138
      %p147 = scmp.eq.s32.totalorder %s22, 0
      %p148 = por %p146, %p147
      %p149 = scmp.ne.s32.totalorder %s137, %s138
      %p150 = scmp.eq.s32.totalorder %s23, 1
      %p151 = por %p149, %p150
      %p153 = scmp.ne.s32.totalorder %s138, %s152
      %p154 = scmp.eq.s32.totalorder %s23, 0
      %p155 = por %p153, %p154
      %s156 = ssub.s32 %s17, %s24
      %p157 = scmp.eq.s32.totalorder %s156, 0
      %s159 = sadd.s32 %s158, 1
      %s160 = scalar_select %p157, %s158, %s159
      %p163 = pneg %p157
      %p164 = scmp.eq.s32.totalorder %s17, 1
      %p165 = por %p163, %p164
      %p166 = scmp.ne.s32.totalorder %s158, %s161
      %p167 = scmp.eq.s32.totalorder %s17, 0
      %p168 = por %p166, %p167
      %p169 = scmp.ne.s32.totalorder %s158, %s161
      %p170 = scmp.eq.s32.totalorder %s22, 1
      %p171 = por %p169, %p170
      %p172 = scmp.ne.s32.totalorder %s161, %s162
      %p173 = scmp.eq.s32.totalorder %s22, 0
      %p174 = por %p172, %p173
      %p175 = scmp.ne.s32.totalorder %s161, %s162
      %p176 = scmp.eq.s32.totalorder %s23, 1
      %p177 = por %p175, %p176
      %p179 = scmp.ne.s32.totalorder %s162, %s178
      %p180 = scmp.eq.s32.totalorder %s23, 0
      %p181 = por %p179, %p180
      %p182 = scmp.le.s32.totalorder 1, %s17
      %p183 = scmp.lt.s32.totalorder %s17, 3
      %p184 = pnand %p182, %p183
      %p185 = pneg %p184
      // Predicated region
      $region9: #{tpu_custom_call.1} parent=5 // pred_check
        _
      $region10: #{tpu_custom_call.1} parent=5 // pred_check_branch
        %187 = sbr.rel (%p184) target = $region12
      $region11: #{tpu_custom_call.1} parent=5 // pred_region
        %s188 = ssub.s32 %s17, 1
        // Predicated region
        $region13: #{tpu_custom_call.1} parent=11 // pred_check
          %p189 = pneg %p64
        $region14: #{tpu_custom_call.1} parent=11 // pred_check_branch
          %191 = sbr.rel (%p189) target = $region16
        $region15: #{tpu_custom_call.1} parent=11 // pred_region
          _
        $region16: #{tpu_custom_call.1} parent=11 // pred_fallthru
          _
        // Predicated region
        $region17: #{tpu_custom_call.1} parent=11 // pred_check
          %p192 = pneg %p85
        $region18: #{tpu_custom_call.1} parent=11 // pred_check_branch
          %194 = sbr.rel (%p192) target = $region20
        $region19: #{tpu_custom_call.1} parent=11 // pred_region
          %196 = vsyncadd [#allocation3], 0
          %s197 = sshll.u32 %s2, 4
          %s198 = int_to_ptr.hbm [resolvable:$true] %s197
          %s199 = sshll.u32 [#allocation2], 4
          %s200 = int_to_ptr.vmem [resolvable:$true] %s199
          %205 = dma.hbm_to_vmem [thread:$0]  %s198, 1024, %s200, [#allocation3], 128, 128, 8
        $region20: #{tpu_custom_call.1} parent=11 // pred_fallthru
          _
        // Predicated region
        $region21: #{tpu_custom_call.1} parent=11 // pred_check
          %p206 = pneg %p106
        $region22: #{tpu_custom_call.1} parent=11 // pred_check_branch
          %208 = sbr.rel (%p206) target = $region24
        $region23: #{tpu_custom_call.1} parent=11 // pred_region
          %210 = vsyncadd [#allocation6], 0
          %s211 = sshll.u32 %s3, 4
          %s212 = int_to_ptr.hbm [resolvable:$true] %s211
          %s213 = sshll.u32 [#allocation5], 4
          %s214 = int_to_ptr.vmem [resolvable:$true] %s213
          %219 = dma.hbm_to_vmem [thread:$0]  %s212, 1024, %s214, [#allocation6], 128, 128, 8
        $region24: #{tpu_custom_call.1} parent=11 // pred_fallthru
          _
        // Predicated region
        $region25: #{tpu_custom_call.1} parent=11 // pred_check
          %p220 = pneg %p127
        $region26: #{tpu_custom_call.1} parent=11 // pred_check_branch
          %222 = sbr.rel (%p220) target = $region28
        $region27: #{tpu_custom_call.1} parent=11 // pred_region
          _
        $region28: #{tpu_custom_call.1} parent=11 // pred_fallthru
          _
        // Predicated region
        $region29: #{tpu_custom_call.1} parent=11 // pred_check
          %p223 = pneg %p148
        $region30: #{tpu_custom_call.1} parent=11 // pred_check_branch
          %225 = sbr.rel (%p223) target = $region32
        $region31: #{tpu_custom_call.1} parent=11 // pred_region
          _
        $region32: #{tpu_custom_call.1} parent=11 // pred_fallthru
          _
      $region12: #{tpu_custom_call.1} parent=5 // pred_fallthru
        _
      %p226 = scmp.lt.s32.totalorder %s17, 2
      // Predicated region
      $region33: #{tpu_custom_call.1} parent=5 // pred_check
        %p227 = pneg %p226
      $region34: #{tpu_custom_call.1} parent=5 // pred_check_branch
        %229 = sbr.rel (%p227) target = $region36
      $region35: #{tpu_custom_call.1} parent=5 // pred_region
        // Predicated region
        $region37: #{tpu_custom_call.1} parent=35 // pred_check
          %p230 = pneg %p37
        $region38: #{tpu_custom_call.1} parent=35 // pred_check_branch
          %232 = sbr.rel (%p230) target = $region40
        $region39: #{tpu_custom_call.1} parent=35 // pred_region
          %p233 = scmp.lt.s32.totalorder %s17, 1
          %s234 = scalar_select %p233, %s17, 1
          %s235 = smul.addr %s234, 8
          %s236 = scalar_lea.vmem %s0, %s235
        $region40: #{tpu_custom_call.1} parent=35 // pred_fallthru
          _
      $region36: #{tpu_custom_call.1} parent=5 // pred_fallthru
        _
      %p237 = scmp.le.s32.totalorder 1, %s17
      %p238 = scmp.lt.s32.totalorder %s17, 3
      %p239 = pnand %p237, %p238
      %p240 = pneg %p239
      // Predicated region
      $region41: #{tpu_custom_call.1} parent=5 // pred_check
        _
      $region42: #{tpu_custom_call.1} parent=5 // pred_check_branch
        %242 = sbr.rel (%p239) target = $region44
      $region43: #{tpu_custom_call.1} parent=5 // pred_region
        %s243 = ssub.s32 %s17, 1
        // Predicated region
        $region45: #{tpu_custom_call.1} parent=43 // pred_check
          %p244 = pneg %p85
        $region46: #{tpu_custom_call.1} parent=43 // pred_check_branch
          %246 = sbr.rel (%p244) target = $region48
        $region47: #{tpu_custom_call.1} parent=43 // pred_region
          %248 = dma.done [#allocation3], 1024
        $region48: #{tpu_custom_call.1} parent=43 // pred_fallthru
          _
        // Predicated region
        $region49: #{tpu_custom_call.1} parent=43 // pred_check
          %p249 = pneg %p106
        $region50: #{tpu_custom_call.1} parent=43 // pred_check_branch
          %251 = sbr.rel (%p249) target = $region52
        $region51: #{tpu_custom_call.1} parent=43 // pred_region
          %253 = dma.done [#allocation6], 1024
        $region52: #{tpu_custom_call.1} parent=43 // pred_fallthru
          _
        %p254 = scmp.lt.s32.totalorder %s22, 1
        %s255 = scalar_select %p254, %s22, 1
        %s256 = smul.addr %s255, 8
        %s257 = scalar_lea.vmem %s0, %s256
        %p258 = pneg %p43
        %p259 = pneg %p40
        %p260 = pneg %p64
        %p261 = pneg %p61
        %p262 = pneg %p85
        %p263 = pneg %p82
        %p264 = pneg %p106
        %p265 = pneg %p103
        %p266 = pneg %p127
        %p267 = pneg %p124
        %p268 = pneg %p148
        %p269 = pneg %p145
        %p270 = pneg %p174
        %p271 = pneg %p171
        %s272 = sand.u32 %s161, 1
        %s273 = scalar_lea.sflag [#allocation4], %s272
        %s274 = sand.u32 %s161, 1
        %s275 = smul.addr %s274, 8
        %s276 = scalar_lea.vmem [#allocation7], %s275
        %p277 = scmp.lt.s32.totalorder %s22, 1
        %s278 = scalar_select %p277, %s22, 1
        %s279 = smul.addr %s278, 8
        %s280 = scalar_lea.vmem %s0, %s279
        %v281 = vld [vmem:[%s280] sm:$0xff]
        %v282 = vld [vmem:[%s1] sm:$0xf]
        %v283 = vld [vmem:[%s4] sm:$0x3f]
        %285 = vset.pattern.permute.xlu0 0
        %286 = vperm.xlu0 %285, %v281
        %v287 = vpop.permute.xlu0 %286
        %v289 = vperm.slane %v282, 0
        %v290 = vmul.f32 %v287, %v289
        %v291 = vperm.slane %v283, 0
        %v292 = vadd.f32 %v291, %v290
        %293 = vset.pattern.permute.xlu0 1
        %294 = vperm.xlu0 %293, %v281
        %v295 = vpop.permute.xlu0 %294
        %v297 = vperm.slane %v282, 1
        %v298 = vmul.f32 %v295, %v297
        %v299 = vadd.f32 %v292, %v298
        %300 = vset.pattern.permute.xlu0 2
        %301 = vperm.xlu0 %300, %v281
        %v302 = vpop.permute.xlu0 %301
        %v304 = vperm.slane %v282, 2
        %v305 = vmul.f32 %v302, %v304
        %v306 = vadd.f32 %v299, %v305
        %307 = vset.pattern.permute.xlu0 3
        %308 = vperm.xlu0 %307, %v281
        %v309 = vpop.permute.xlu0 %308
        %v311 = vperm.slane %v282, 3
        %v312 = vmul.f32 %v309, %v311
        %v313 = vadd.f32 %v306, %v312
        %vm314 = vcmask 523264
        %v315 = vsel %vm314, %v313, 0.0
        %316 = vadd.xlane.f32.xlu0 %v315
        %v317 = vpop.xlane.xlu0 %316
        %v318 = vrcp.pop 64.0
        %v319 = vmul.f32 64.0, %v318
        %v320 = vsub.f32 1.0, %v319
        %v321 = vmul.f32 %v318, %v320
        %v322 = vadd.f32 %v318, %v321
        %vm323 = vweird.f32 %v318
        %v324 = vsel %vm323, %v318, %v322
        %v325 = vmul.f32 %v317, %v324
        %v326 = vsub.f32 %v313, %v325
        %v327 = vmul.f32 %v326, %v326
        %v328 = vsel %vm314, %v327, 0.0
        %329 = vadd.xlane.f32.xlu0 %v328
        %v330 = vpop.xlane.xlu0 %329
        %v331 = vmul.f32 %v330, %v324
        %v332 = vadd.f32 %v331, 1e-05
        %v333 = vrsqrt.pop %v332
        %v334 = vmul.f32 %v333, %v332
        %v335 = vmul.f32 %v334, %v333
        %v336 = vmul.f32 0.5, %v335
        %v337 = vsub.f32 1.5, %v336
        %v338 = vmul.f32 %v333, %v337
        %vm339 = vweird.f32 %v332
        %vm340 = vweird.f32 %v333
        %vm341 = vmor %vm339, %vm340
        %v342 = vsel %vm341, %v333, %v338
        %v343 = vmul.f32 %v326, %v342
        %v344 = vperm.slane %v283, 1
        %v345 = vmul.f32 %v343, %v344
        %v346 = vperm.slane %v283, 2
        %v347 = vadd.f32 %v345, %v346
        %v348 = vmax.f32 %v347, 0.0
        %v349 = vld [vmem:[#allocation2] sm:$0xff]
        %v350 = vld [vmem:[#allocation2 + $0x8] sm:$0xff]
        %v351 = vld [vmem:[#allocation2 + $0x10] sm:$0xff]
        %v352 = vld [vmem:[#allocation2 + $0x18] sm:$0xff]
        %v353 = vld [vmem:[#allocation2 + $0x20] sm:$0xff]
        %v354 = vld [vmem:[#allocation2 + $0x28] sm:$0xff]
        %v355 = vld [vmem:[#allocation2 + $0x30] sm:$0xff]
        %v356 = vld [vmem:[#allocation2 + $0x38] sm:$0xff]
        %v357 = vperm.slane %v283, 3
        %v359 = vsel %vm314, %v348, 0
        %361 = vmatpush.msra.mxu0 0.0
        %362 = vmatpush.msra.mxu0 0.0
        %363 = vmatpush.msra.mxu0 0.0
        %364 = vmatpush.msra.mxu0 0.0
        %365 = vmatpush.msra.mxu0 0.0
        %366 = vmatpush.msra.mxu0 0.0
        %367 = vmatpush.msra.mxu0 0.0
        %368 = vmatpush.msra.mxu0 0.0
        %369 = vmatpush.msra.mxu0 %v356
        %370 = vmatpush.msra.mxu0 %v355
        %371 = vmatpush.msra.mxu0 %v354
        %372 = vmatpush.msra.mxu0 %v353
        %373 = vmatpush.msra.mxu0 %v352
        %374 = vmatpush.msra.mxu0 %v351
        %375 = vmatpush.msra.mxu0 %v350
        %376 = vmatpush.msra.mxu0 %v349
        %377 = vmatmul.f32.gmra.mxu0 %v359
        %v378 = vpop.f32.mrf.mxu0
        %v379 = vadd.f32 %v357, %v378
        %380 = vdwg.mxu0
        %v381 = vsel %vm314, %v379, 0.0
        %382 = vadd.xlane.f32.xlu0 %v381
        %v383 = vpop.xlane.xlu0 %382
        %v384 = vmul.f32 %v383, %v324
        %v385 = vsub.f32 %v379, %v384
        %v386 = vmul.f32 %v385, %v385
        %v387 = vsel %vm314, %v386, 0.0
        %388 = vadd.xlane.f32.xlu0 %v387
        %v389 = vpop.xlane.xlu0 %388
        %v390 = vmul.f32 %v389, %v324
        %v391 = vadd.f32 %v390, 1e-05
        %v392 = vrsqrt.pop %v391
        %v393 = vmul.f32 %v392, %v391
        %v394 = vmul.f32 %v393, %v392
        %v395 = vmul.f32 0.5, %v394
        %v396 = vsub.f32 1.5, %v395
        %v397 = vmul.f32 %v392, %v396
        %vm398 = vweird.f32 %v391
        %vm399 = vweird.f32 %v392
        %vm400 = vmor %vm398, %vm399
        %v401 = vsel %vm400, %v392, %v397
        %v402 = vmul.f32 %v385, %v401
        %v403 = vperm.slane %v283, 4
        %v404 = vmul.f32 %v402, %v403
        %v405 = vperm.slane %v283, 5
        %v406 = vadd.f32 %v404, %v405
        %v407 = vmax.f32 %v406, 0.0
        %v408 = vld [vmem:[#allocation5] sm:$0xff]
        %v409 = vld [vmem:[#allocation5 + $0x8] sm:$0xff]
        %v410 = vld [vmem:[#allocation5 + $0x10] sm:$0xff]
        %v411 = vld [vmem:[#allocation5 + $0x18] sm:$0xff]
        %v412 = vld [vmem:[#allocation5 + $0x20] sm:$0xff]
        %v413 = vld [vmem:[#allocation5 + $0x28] sm:$0xff]
        %v414 = vld [vmem:[#allocation5 + $0x30] sm:$0xff]
        %v415 = vld [vmem:[#allocation5 + $0x38] sm:$0xff]
        %v416 = vld [vmem:[%s5] sm:$0x1]
        %v418 = vperm.slane %v416, 0
        %v421 = vsel %vm314, %v407, 0
        %423 = vmatpush.msra.mxu0 0.0
        %424 = vmatpush.msra.mxu0 0.0
        %425 = vmatpush.msra.mxu0 0.0
        %426 = vmatpush.msra.mxu0 0.0
        %427 = vmatpush.msra.mxu0 0.0
        %428 = vmatpush.msra.mxu0 0.0
        %429 = vmatpush.msra.mxu0 0.0
        %430 = vmatpush.msra.mxu0 0.0
        %431 = vmatpush.msra.mxu0 %v415
        %432 = vmatpush.msra.mxu0 %v414
        %433 = vmatpush.msra.mxu0 %v413
        %434 = vmatpush.msra.mxu0 %v412
        %435 = vmatpush.msra.mxu0 %v411
        %436 = vmatpush.msra.mxu0 %v410
        %437 = vmatpush.msra.mxu0 %v409
        %438 = vmatpush.msra.mxu0 %v408
        %439 = vmatmul.f32.gmra.mxu0 %v421
        %v440 = vpop.f32.mrf.mxu0
        %v441 = vadd.f32 %v418, %v440
        %442 = vdwg.mxu0
        %443 = vmax.xlane.f32.xlu0 %v441
        %v444 = vpop.xlane.xlu0 %443
        %v445 = vsub.f32 %v441, %v444
        %v446 = vmul.f32 %v445, 1.442695
        %v447 = vpow.pop %v446
        %448 = vadd.xlane.f32.xlu0 %v447
        %v449 = vpop.xlane.xlu0 %448
        %v450 = vrcp.pop %v449
        %v451 = vmul.f32 %v447, %v450
        %452 = vst [vmem:[%s276] sm:$0xff] %v451
        %s453 = sand.u32 %s161, 1
        %s454 = scalar_lea.sflag [#allocation4], %s453
        %s455 = sand.u32 %s161, 1
        %s456 = smul.addr %s455, 8
        %s457 = scalar_lea.vmem [#allocation7], %s456
        // Predicated region
        $region53: #{tpu_custom_call.1} parent=43 // pred_check
          %p458 = pneg %p171
        $region54: #{tpu_custom_call.1} parent=43 // pred_check_branch
          %460 = sbr.rel (%p458) target = $region56
        $region55: #{tpu_custom_call.1} parent=43 // pred_region
          %462 = vsyncadd %s454, 0
          %s463 = smul.addr %s22, 8
          %s464 = scalar_lea.hbm %s6, %s463
          %s466 = sshll.u32 %s457, 4
          %s467 = int_to_ptr.vmem [resolvable:$true] %s466
          %s468 = sshll.u32 %s464, 4
          %s469 = int_to_ptr.hbm [resolvable:$true] %s468
          %471 = dma.vmem_to_hbm [thread:$0]  %s467, 128, %s469, %s454
        $region56: #{tpu_custom_call.1} parent=43 // pred_fallthru
          _
      $region44: #{tpu_custom_call.1} parent=5 // pred_fallthru
        _
      %p472 = scmp.le.s32.totalorder 2, %s17
      // Predicated region
      $region57: #{tpu_custom_call.1} parent=5 // pred_check
        %p473 = pneg %p472
      $region58: #{tpu_custom_call.1} parent=5 // pred_check_branch
        %475 = sbr.rel (%p473) target = $region60
      $region59: #{tpu_custom_call.1} parent=5 // pred_region
        %s476 = ssub.s32 %s17, 2
        // Predicated region
        $region61: #{tpu_custom_call.1} parent=59 // pred_check
          %p477 = pneg %p177
        $region62: #{tpu_custom_call.1} parent=59 // pred_check_branch
          %479 = sbr.rel (%p477) target = $region64
        $region63: #{tpu_custom_call.1} parent=59 // pred_region
          %s480 = sand.u32 %s162, 1
          %s481 = scalar_lea.sflag [#allocation4], %s480
          %s482 = sand.u32 %s162, 1
          %s483 = smul.addr %s482, 8
          %s484 = scalar_lea.vmem [#allocation7], %s483
          %486 = dma.done %s481, 128
        $region64: #{tpu_custom_call.1} parent=59 // pred_fallthru
          _
      $region60: #{tpu_custom_call.1} parent=5 // pred_fallthru
        _
    $region6: #{tpu_custom_call.1} parent=1 // loop_footer
      %s21 = sadd.s32 1, %s17
    $region7: #{tpu_custom_call.1} parent=1 // loop_footer_branch
      %16 = sbr.rel target = $region3
    $region8: #{tpu_custom_call.1} parent=1 // loop_exit
      _
    %487 = vsyncpa [#allocation3], 1
    %s488 = scalar_lea.sflag [#allocation3], 1
    %489 = vsyncpa %s488, 1
    %490 = vsyncpa [#allocation6], 1
    %491 = vsyncpa [#allocation4], 1
    %s492 = scalar_lea.sflag [#allocation4], 1
    %493 = vsyncpa %s492, 1

</llo_original>
